<compile_context>
chip_gen: v7x
topology: tpu7x:2x2x1
jax: 0.10.0
libtpu: 0.0.40
codegen_flags: <defaults>
</compile_context>

<pallas_src>
import functools

import jax
import jax.numpy as jnp
from jax.experimental import pallas as pl
from jax.experimental.pallas import tpu as pltpu


# ----------------------------- Pallas kernels ------------------------------ #

def _train_kernel(arc_ref, out_ref, *, inv_temp):
    """Training mode: arch_set = softmax(arc / T, dim=1)."""
    s = arc_ref[...].astype(jnp.float32) * inv_temp
    m = jnp.max(s, axis=-1, keepdims=True)
    e = jnp.exp(s - m)
    denom = jnp.sum(e, axis=-1, keepdims=True)
    # approx=False keeps rows summing to 1 within the 1e-5 check; approx=True
    # would ride the EUP slot for a small extra win if tolerance allows.
    out_ref[...] = (e * pl.reciprocal(denom, approx=False)).astype(out_ref.dtype)


def _eval_kernel(arc_ref, out_ref):
    """Eval mode: one-hot of the first (lowest-index) row maximum.

    softmax is order-preserving, so argmax is taken directly on the logits —
    no exp / sum / divide needed.
    """
    s = arc_ref[...].astype(jnp.float32)
    m = jnp.max(s, axis=-1, keepdims=True)
    c = s.shape[-1]
    col = jax.lax.broadcasted_iota(jnp.int32, s.shape, dimension=1)
    # torch.max returns the FIRST maximal index on ties -> min index where max.
    first = jnp.min(jnp.where(s == m, col, c), axis=-1, keepdims=True)
    out_ref[...] = (col == first).astype(out_ref.dtype)


# ------------------------------ Wrapper call -------------------------------- #

def _pick_row_tile(n, c, *, bytes_per_elem=4, vmem_budget=8 << 20, max_tile=1024):
    """Row tile: multiple of 8, VMEM-budget aware, >=2 grid steps when possible."""
    if n < 16:
        return n  # full-extent block is always legal
    # Double-buffered in + out per step ~= 4 * tm * c * bytes_per_elem.
    budget_tm = (vmem_budget // (4 * bytes_per_elem * c)) // 8 * 8
    budget_tm = max(8, budget_tm)
    half = max(8, (n // 2) // 8 * 8)      # guarantee >=2 grid steps (v7x 2 TCs)
    return max(8, min(max_tile, budget_tm, half))


def search_graph_l2_forward(x, arc, temperature, *, training):
    """Mirrors SearchGraph_l2.forward: x is accepted but ignored (as in spec)."""
    del x  # the reference forward never uses its input
    n, c = arc.shape
    inv_temp = float(1.0 / temperature)   # temperature is a static module attr
    tm = _pick_row_tile(n, c)
    grid = (pl.cdiv(n, tm),)              # partial tail block is masked by Pallas

    if training:
        kernel = functools.partial(_train_kernel, inv_temp=inv_temp)
    else:
        kernel = _eval_kernel

    return pl.pallas_call(
        kernel,
        out_shape=jax.ShapeDtypeStruct((n, c), jnp.float32),
        grid=grid,
        in_specs=[pl.BlockSpec((tm, c), lambda i: (i, 0))],
        out_specs=pl.BlockSpec((tm, c), lambda i: (i, 0)),
        compiler_params=pltpu.CompilerParams(
            dimension_semantics=("parallel",)),
    )(arc)


# ---------------------------------- Main ------------------------------------ #

if __name__ == "__main__":
    NUM_NODES = 64
    IN_CHANNELS = 16        # shape of the (ignored) input x
    HIDDEN_CHANNELS = 128   # lane-dense output (multiple of 128)
    NUM_LAYERS = 2          # stored by the module; unused in forward
    TEMPERATURE = 0.07

    key = jax.random.PRNGKey(0)
    k_x, k_arc = jax.random.split(key)

    # Deterministic example input (ignored by the forward, kept for fidelity).
    x = jax.random.normal(k_x, (NUM_NODES, IN_CHANNELS), jnp.float32)

    # Case 1: the module's default init: arc = ones / num_nodes (uniform rows,
    #         exercises the tie-break -> one-hot at column 0 in eval mode).
    arc_init = jnp.ones((NUM_NODES, HIDDEN_CHANNELS), jnp.float32) / NUM_NODES
    # Case 2: a "trained" arc with distinct per-row maxima.
    arc_rand = arc_init + 0.01 * jax.random.normal(
        k_arc, (NUM_NODES, HIDDEN_CHANNELS), jnp.float32)

    def ref_forward(arc, training):
        p = jax.nn.softmax(arc / TEMPERATURE, axis=1)
        if training:
            return p
        idx = jnp.argmax(p, axis=1)           # first max on ties, like torch
        return jnp.eye(p.shape[1], dtype=p.dtype)[idx]

    ok = True
    for arc in (arc_init, arc_rand):
        for training in (True, False):
            out = search_graph_l2_forward(x, arc, TEMPERATURE,
                                          training=training)
            jax.block_until_ready(out)
            ref = ref_forward(arc, training)
            ok = ok and bool(jnp.allclose(out, ref, atol=1e-5, rtol=1e-5))

    assert ok
    print("KERNEL_OK")
</pallas_src>

<mosaic_0001>
module attributes {stable_mosaic.version = 11 : i64} {
  func.func @_train_kernel(%arg0: i32, %arg1: memref<32x128xf32, #tpu.memory_space<vmem>>, %arg2: memref<32x128xf32, #tpu.memory_space<vmem>>) attributes {dimension_semantics = [#tpu.dimension_semantics<parallel>], iteration_bounds = array<i64: 2>, scalar_prefetch = 0 : i64, scratch_operands = 0 : i64, tpu.core_type = #tpu.core_type<tc>, window_params = [{transform_indices = @transform_0, window_bounds = array<i64: 32, 128>}, {transform_indices = @transform_1, window_bounds = array<i64: 32, 128>}]} {
    %c0 = arith.constant 0 : index
    %c0_0 = arith.constant 0 : index
    %0 = vector.load %arg1[%c0, %c0_0] : memref<32x128xf32, #tpu.memory_space<vmem>>, vector<32x128xf32>
    %cst = arith.constant 14.2857141 : f32
    %1 = vector.broadcast %cst : f32 to vector<32x128xf32>
    %2 = arith.mulf %0, %1 : vector<32x128xf32>
    %cst_1 = arith.constant dense<0xFF800000> : vector<32xf32>
    %3 = vector.multi_reduction <maximumf>, %2, %cst_1 [1] : vector<32x128xf32> to vector<32xf32>
    %4 = vector.shape_cast %3 : vector<32xf32> to vector<32x1xf32>
    %5 = vector.broadcast %4 : vector<32x1xf32> to vector<32x128xf32>
    %6 = arith.subf %2, %5 : vector<32x128xf32>
    %7 = math.exp %6 : vector<32x128xf32>
    %cst_2 = arith.constant dense<0.000000e+00> : vector<32xf32>
    %8 = vector.multi_reduction <add>, %7, %cst_2 [1] : vector<32x128xf32> to vector<32xf32>
    %9 = vector.shape_cast %8 : vector<32xf32> to vector<32x1xf32>
    %10 = tpu.reciprocal %9 : vector<32x1xf32> -> vector<32x1xf32>
    %11 = vector.broadcast %10 : vector<32x1xf32> to vector<32x128xf32>
    %12 = arith.mulf %7, %11 : vector<32x128xf32>
    %c0_3 = arith.constant 0 : index
    %c0_4 = arith.constant 0 : index
    %13 = vector.load %arg2[%c0_3, %c0_4] : memref<32x128xf32, #tpu.memory_space<vmem>>, vector<32x128xf32>
    tpu.vector_store %arg2[%c0_3, %c0_4], %12 {strides = array<i32>} : memref<32x128xf32, #tpu.memory_space<vmem>>, vector<32x128xf32>,
    return
  }
  func.func @transform_0(%arg0: i32) -> (i32, i32) {
    %c0_i32 = arith.constant 0 : i32
    %c0_i32_0 = arith.constant 0 : i32
    return %arg0, %c0_i32 : i32, i32
  }
  func.func @transform_1(%arg0: i32) -> (i32, i32) {
    %c0_i32 = arith.constant 0 : i32
    %c0_i32_0 = arith.constant 0 : i32
    return %arg0, %c0_i32 : i32, i32
  }
}

</mosaic_0001>

<llo_original>
// kernel: tpu_custom_call.1
$region0: #{tpu_custom_call.1}
  #allocation0 [shape = 'u32[]', space=smem, size = 0x4, offset = 0x4, fixed_abs, tag = 'smem constant byte address 0x4 - core index']
  #allocation1 [shape = 'u32[144,128]{1,0:T(1,128)}', space=vmem, size = 0x12000, scoped, tag = 'internal scratch']
  %s0 = inlined_call_operand.hbm [shape: f32[64,128], index: 0, kind: input, shape index: {}]
  %s1 = inlined_call_operand.hbm [shape: f32[64,128], index: 1, kind: output, shape index: {}]
  %s2 = sld [smem:[#allocation0]]
  $region41: #{tpu_custom_call.1} parent=0
    _
  %s4 = ssub.s32 1, %s2
  %s5 = scalar_select 0, %s4, %s2
  $region1: #{tpu_custom_call.1} parent=0
    #allocation2 [shape = 'u8[32768]{0}', space=vmem, size = 0x8000, scoped, tag = 'input window, operand 0']
    #allocation3 [shape = 's32[2]{0}', space=sflag, size = 0x8, scoped, tag = 'scoped memory for tpu_custom_call.1']
    #allocation4 [shape = 's32[2]{0}', space=sflag, size = 0x8, scoped, tag = 'scoped memory for tpu_custom_call.1']
    #allocation5 [shape = 'u8[32768]{0}', space=vmem, size = 0x8000, scoped, tag = 'output window, operand 0']
    %6 = vsyncpa [#allocation3], 0
    %s7 = scalar_lea.sflag [#allocation3], 1
    %8 = vsyncpa %s7, 0
    %9 = vsyncpa [#allocation4], 0
    %s10 = scalar_lea.sflag [#allocation4], 1
    %11 = vsyncpa %s10, 0
    loop: start=0, step=1, limit=4
    $region2: #{tpu_custom_call.1} parent=1 // loop_pre_header
      _
    $region3: #{tpu_custom_call.1} parent=1 // loop_header
      %s13 = sphi 0, %s17
      %p14 = scmp.ge.s32.totalorder %s13, 4
      %s23 = sphi 0, %s25
      %s26 = sphi 0, %s23
      %s27 = sphi 0, %s26
      %s43 = sphi 0, %s27
      %s49 = sphi 0, %s51
      %s52 = sphi 0, %s49
      %s53 = sphi 0, %s52
      %s69 = sphi 0, %s53
    $region4: #{tpu_custom_call.1} parent=1 // loop_header_branch
      %16 = sbr.rel (%p14) target = $region8
    $region5: #{tpu_custom_call.1} parent=1 // loop_body
      %s18 = ssub.s32 %s13, 1
      %s19 = ssub.s32 %s13, 2
      %s20 = sadd.s32 %s13, 1
      %s21 = ssub.s32 %s13, %s20
      %p22 = scmp.eq.s32.totalorder %s21, 0
      %s24 = sadd.s32 %s23, 1
      %s25 = scalar_select %p22, %s23, %s24
      %p28 = pneg %p22
      %p29 = scmp.eq.s32.totalorder %s13, 1
      %p30 = por %p28, %p29
      %p31 = scmp.ne.s32.totalorder %s23, %s26
      %p32 = scmp.eq.s32.totalorder %s13, 0
      %p33 = por %p31, %p32
      %p34 = scmp.ne.s32.totalorder %s23, %s26
      %p35 = scmp.eq.s32.totalorder %s18, 1
      %p36 = por %p34, %p35
      %p37 = scmp.ne.s32.totalorder %s26, %s27
      %p38 = scmp.eq.s32.totalorder %s18, 0
      %p39 = por %p37, %p38
      %p40 = scmp.ne.s32.totalorder %s26, %s27
      %p41 = scmp.eq.s32.totalorder %s19, 1
      %p42 = por %p40, %p41
      %p44 = scmp.ne.s32.totalorder %s27, %s43
      %p45 = scmp.eq.s32.totalorder %s19, 0
      %p46 = por %p44, %p45
      %s47 = ssub.s32 %s13, %s20
      %p48 = scmp.eq.s32.totalorder %s47, 0
      %s50 = sadd.s32 %s49, 1
      %s51 = scalar_select %p48, %s49, %s50
      %p54 = pneg %p48
      %p55 = scmp.eq.s32.totalorder %s13, 1
      %p56 = por %p54, %p55
      %p57 = scmp.ne.s32.totalorder %s49, %s52
      %p58 = scmp.eq.s32.totalorder %s13, 0
      %p59 = por %p57, %p58
      %p60 = scmp.ne.s32.totalorder %s49, %s52
      %p61 = scmp.eq.s32.totalorder %s18, 1
      %p62 = por %p60, %p61
      %p63 = scmp.ne.s32.totalorder %s52, %s53
      %p64 = scmp.eq.s32.totalorder %s18, 0
      %p65 = por %p63, %p64
      %p66 = scmp.ne.s32.totalorder %s52, %s53
      %p67 = scmp.eq.s32.totalorder %s19, 1
      %p68 = por %p66, %p67
      %p70 = scmp.ne.s32.totalorder %s53, %s69
      %p71 = scmp.eq.s32.totalorder %s19, 0
      %p72 = por %p70, %p71
      %p73 = scmp.le.s32.totalorder 1, %s13
      %p74 = scmp.lt.s32.totalorder %s13, 3
      %p75 = pnand %p73, %p74
      %p76 = pneg %p75
      // Predicated region
      $region9: #{tpu_custom_call.1} parent=5 // pred_check
        _
      $region10: #{tpu_custom_call.1} parent=5 // pred_check_branch
        %78 = sbr.rel (%p75) target = $region12
      $region11: #{tpu_custom_call.1} parent=5 // pred_region
        %s79 = ssub.s32 %s13, 1
      $region12: #{tpu_custom_call.1} parent=5 // pred_fallthru
        _
      %p80 = scmp.lt.s32.totalorder %s13, 2
      // Predicated region
      $region13: #{tpu_custom_call.1} parent=5 // pred_check
        %p81 = pneg %p80
      $region14: #{tpu_custom_call.1} parent=5 // pred_check_branch
        %83 = sbr.rel (%p81) target = $region16
      $region15: #{tpu_custom_call.1} parent=5 // pred_region
        // Predicated region
        $region17: #{tpu_custom_call.1} parent=15 // pred_check
          %p84 = pneg %p33
        $region18: #{tpu_custom_call.1} parent=15 // pred_check_branch
          %86 = sbr.rel (%p84) target = $region20
        $region19: #{tpu_custom_call.1} parent=15 // pred_region
          %s87 = sand.u32 %s23, 1
          %s88 = scalar_lea.sflag [#allocation3], %s87
          %s89 = sand.u32 %s23, 1
          %s90 = smul.addr %s89, 32
          %s91 = scalar_lea.vmem [#allocation2], %s90
          %s92 = smul.u32 4, %s13
          %s94 = ssub.s32 512, 512
          %95 = vsyncadd %s88, %s94
          %s96 = smul.addr %s92, 128
          %s97 = scalar_lea.hbm %s0, %s96
          %s98 = sshll.u32 %s91, 4
          %s99 = int_to_ptr.vmem [resolvable:$true] %s98
          %104 = dma.hbm_to_vmem [thread:$0]  %s97, 512, %s99, %s88, 128, 128, 8
        $region20: #{tpu_custom_call.1} parent=15 // pred_fallthru
          _
      $region16: #{tpu_custom_call.1} parent=5 // pred_fallthru
        _
      %p105 = scmp.le.s32.totalorder 1, %s13
      %p106 = scmp.lt.s32.totalorder %s13, 3
      %p107 = pnand %p105, %p106
      %p108 = pneg %p107
      // Predicated region
      $region21: #{tpu_custom_call.1} parent=5 // pred_check
        _
      $region22: #{tpu_custom_call.1} parent=5 // pred_check_branch
        %110 = sbr.rel (%p107) target = $region24
      $region23: #{tpu_custom_call.1} parent=5 // pred_region
        %s111 = ssub.s32 %s13, 1
        %s112 = sand.u32 %s26, 1
        %s113 = scalar_lea.sflag [#allocation3], %s112
        %s114 = sand.u32 %s26, 1
        %s115 = smul.addr %s114, 32
        %s116 = scalar_lea.vmem [#allocation2], %s115
        // Predicated region
        $region25: #{tpu_custom_call.1} parent=23 // pred_check
          %p117 = pneg %p39
        $region26: #{tpu_custom_call.1} parent=23 // pred_check_branch
          %119 = sbr.rel (%p117) target = $region28
        $region27: #{tpu_custom_call.1} parent=23 // pred_region
          %120 = dma.done %s113, 512
        $region28: #{tpu_custom_call.1} parent=23 // pred_fallthru
          _
        %s121 = sand.u32 %s26, 1
        %s122 = scalar_lea.sflag [#allocation3], %s121
        %s123 = sand.u32 %s26, 1
        %s124 = smul.addr %s123, 32
        %s125 = scalar_lea.vmem [#allocation2], %s124
        %p126 = pneg %p39
        %p127 = pneg %p36
        %p128 = pneg %p65
        %p129 = pneg %p62
        %s130 = sand.u32 %s52, 1
        %s131 = scalar_lea.sflag [#allocation4], %s130
        %s132 = sand.u32 %s52, 1
        %s133 = smul.addr %s132, 32
        %s134 = scalar_lea.vmem [#allocation5], %s133
        %s135 = smul.u32 4, %s18
        %s136 = smul.u32 4, %s18
        %v137 = vld [vmem:[%s116] sm:$0xff]
        %v138 = vld [vmem:[%s116 + $0x8] sm:$0xff]
        %v139 = vld [vmem:[%s116 + $0x10] sm:$0xff]
        %v140 = vld [vmem:[%s116 + $0x18] sm:$0xff]
        %v141 = vmul.f32 %v137, 14.285714
        %v142 = vmul.f32 %v138, 14.285714
        %v143 = vmul.f32 %v139, 14.285714
        %v144 = vmul.f32 %v140, 14.285714
        %145 = vmax.xlane.f32.xlu0 %v141
        %v146 = vpop.xlane.xlu0 %145
        %147 = vmax.xlane.f32.xlu0 %v142
        %v148 = vpop.xlane.xlu0 %147
        %149 = vmax.xlane.f32.xlu0 %v143
        %v150 = vpop.xlane.xlu0 %149
        %151 = vmax.xlane.f32.xlu0 %v144
        %v152 = vpop.xlane.xlu0 %151
        %v153 = vsub.f32 %v141, %v146
        %v154 = vsub.f32 %v142, %v148
        %v155 = vsub.f32 %v143, %v150
        %v156 = vsub.f32 %v144, %v152
        %v157 = vmul.f32 %v153, 1.442695
        %v158 = vpow.pop %v157
        %v159 = vmul.f32 %v154, 1.442695
        %v160 = vpow.pop %v159
        %v161 = vmul.f32 %v155, 1.442695
        %v162 = vpow.pop %v161
        %v163 = vmul.f32 %v156, 1.442695
        %v164 = vpow.pop %v163
        %165 = vadd.xlane.f32.xlu0 %v158
        %v166 = vpop.xlane.xlu0 %165
        %167 = vadd.xlane.f32.xlu0 %v160
        %v168 = vpop.xlane.xlu0 %167
        %169 = vadd.xlane.f32.xlu0 %v162
        %v170 = vpop.xlane.xlu0 %169
        %171 = vadd.xlane.f32.xlu0 %v164
        %v172 = vpop.xlane.xlu0 %171
        %v173 = vrcp.pop %v166
        %v174 = vrcp.pop %v168
        %v175 = vrcp.pop %v170
        %v176 = vrcp.pop %v172
        %v177 = vmul.f32 %v158, %v173
        %v178 = vmul.f32 %v160, %v174
        %v179 = vmul.f32 %v162, %v175
        %v180 = vmul.f32 %v164, %v176
        %181 = vst [vmem:[%s134] sm:$0xff] %v177
        %182 = vst [vmem:[%s134 + $0x8] sm:$0xff] %v178
        %183 = vst [vmem:[%s134 + $0x10] sm:$0xff] %v179
        %184 = vst [vmem:[%s134 + $0x18] sm:$0xff] %v180
        %s185 = sand.u32 %s52, 1
        %s186 = scalar_lea.sflag [#allocation4], %s185
        %s187 = sand.u32 %s52, 1
        %s188 = smul.addr %s187, 32
        %s189 = scalar_lea.vmem [#allocation5], %s188
        // Predicated region
        $region29: #{tpu_custom_call.1} parent=23 // pred_check
          %p190 = pneg %p62
        $region30: #{tpu_custom_call.1} parent=23 // pred_check_branch
          %192 = sbr.rel (%p190) target = $region32
        $region31: #{tpu_custom_call.1} parent=23 // pred_region
          %s193 = smul.u32 4, %s18
          %s195 = ssub.s32 512, 512
          %196 = vsyncadd %s186, %s195
          %s197 = smul.addr %s193, 128
          %s198 = scalar_lea.hbm %s1, %s197
          %s199 = sshll.u32 %s189, 4
          %s200 = int_to_ptr.vmem [resolvable:$true] %s199
          %205 = dma.vmem_to_hbm [thread:$0]  %s200, 512, %s198, %s186, 128, 128, 8
        $region32: #{tpu_custom_call.1} parent=23 // pred_fallthru
          _
      $region24: #{tpu_custom_call.1} parent=5 // pred_fallthru
        _
      %p206 = scmp.le.s32.totalorder 2, %s13
      // Predicated region
      $region33: #{tpu_custom_call.1} parent=5 // pred_check
        %p207 = pneg %p206
      $region34: #{tpu_custom_call.1} parent=5 // pred_check_branch
        %209 = sbr.rel (%p207) target = $region36
      $region35: #{tpu_custom_call.1} parent=5 // pred_region
        %s210 = ssub.s32 %s13, 2
        // Predicated region
        $region37: #{tpu_custom_call.1} parent=35 // pred_check
          %p211 = pneg %p68
        $region38: #{tpu_custom_call.1} parent=35 // pred_check_branch
          %213 = sbr.rel (%p211) target = $region40
        $region39: #{tpu_custom_call.1} parent=35 // pred_region
          %s214 = sand.u32 %s53, 1
          %s215 = scalar_lea.sflag [#allocation4], %s214
          %s216 = sand.u32 %s53, 1
          %s217 = smul.addr %s216, 32
          %s218 = scalar_lea.vmem [#allocation5], %s217
          %219 = dma.done %s215, 512
        $region40: #{tpu_custom_call.1} parent=35 // pred_fallthru
          _
      $region36: #{tpu_custom_call.1} parent=5 // pred_fallthru
        _
    $region6: #{tpu_custom_call.1} parent=1 // loop_footer
      %s17 = sadd.s32 1, %s13
    $region7: #{tpu_custom_call.1} parent=1 // loop_footer_branch
      %12 = sbr.rel target = $region3
    $region8: #{tpu_custom_call.1} parent=1 // loop_exit
      _
    %220 = vsyncpa [#allocation3], 1
    %s221 = scalar_lea.sflag [#allocation3], 1
    %222 = vsyncpa %s221, 1
    %223 = vsyncpa [#allocation4], 1
    %s224 = scalar_lea.sflag [#allocation4], 1
    %225 = vsyncpa %s224, 1

</llo_original>
